<compile_context>
chip_gen: v6e
topology: v6e:2x2x1
jax: 0.10.0
libtpu: 0.0.40
codegen_flags: <defaults>
</compile_context>

<pallas_src>
import functools

import jax
import jax.numpy as jnp
from jax import lax
from jax.experimental import pallas as pl
from jax.experimental.pallas import tpu as pltpu

_LANE = 128
_GROUP = 64  # rows per fused inner-loop group (8 f32 vregs per input)


def _soft_dice_kernel(x_ref, y_ref, tp_out, sx_out, sy_out,
                      tp_acc, sx_acc, sy_acc, *,
                      splits, chunks_per_split, num_chunks,
                      tile_rows, group_rows, tail_rows):
    c = pl.program_id(1)  # local chunk index (reduction axis, innermost)
    if splits == 1:
        gchunk = c
    else:
        gchunk = (pl.program_id(0) % splits) * chunks_per_split + c

    @pl.when(c == 0)
    def _init():
        tp_acc[...] = jnp.zeros_like(tp_acc)
        sx_acc[...] = jnp.zeros_like(sx_acc)
        sy_acc[...] = jnp.zeros_like(sy_acc)

    def _accum_groups(n_groups, tp, sx, sy):
        # Single fused pass over the tile: each x/y vreg is loaded from VMEM
        # exactly once and feeds all three (8,128) lane-wise accumulators.
        # Temporaries stay bounded at `group_rows` rows regardless of tile size.
        def body(g, carry):
            tp, sx, sy = carry
            r0 = pl.multiple_of(g * group_rows, group_rows)
            xg = x_ref[pl.ds(r0, group_rows), :].astype(jnp.float32)
            yg = y_ref[pl.ds(r0, group_rows), :].astype(jnp.float32)
            pg = xg * yg
            tp = tp + jnp.sum(pg.reshape(-1, 8, _LANE), axis=0)
            sx = sx + jnp.sum(xg.reshape(-1, 8, _LANE), axis=0)
            sy = sy + jnp.sum(yg.reshape(-1, 8, _LANE), axis=0)
            return tp, sx, sy
        return lax.fori_loop(0, n_groups, body, (tp, sx, sy))

    # Fast path: every chunk except the globally-last one is fully valid,
    # so no masking work runs on the hot path.
    @pl.when(gchunk < num_chunks - 1)
    def _full():
        tp, sx, sy = _accum_groups(tile_rows // group_rows,
                                   tp_acc[...], sx_acc[...], sy_acc[...])
        tp_acc[...] = tp
        sx_acc[...] = sx
        sy_acc[...] = sy

    # Tail path: the globally-last chunk; only `tail_rows` rows hold real data.
    # Rows past that are out-of-bounds block data and are zeroed with a select
    # *before* any arithmetic, so NaN/Inf garbage cannot leak into the sums.
    @pl.when(gchunk == num_chunks - 1)
    def _tail():
        full_g = tail_rows // group_rows   # static
        rem = tail_rows % group_rows       # static
        tp, sx, sy = _accum_groups(full_g, tp_acc[...], sx_acc[...], sy_acc[...])
        if rem:
            r0 = full_g * group_rows       # static, within the tile
            xg = x_ref[pl.ds(r0, group_rows), :].astype(jnp.float32)
            yg = y_ref[pl.ds(r0, group_rows), :].astype(jnp.float32)
            row = lax.broadcasted_iota(jnp.int32, (group_rows, _LANE), 0)
            valid = row < rem
            xg = jnp.where(valid, xg, 0.0)
            yg = jnp.where(valid, yg, 0.0)
            pg = xg * yg
            tp = tp + jnp.sum(pg.reshape(-1, 8, _LANE), axis=0)
            sx = sx + jnp.sum(xg.reshape(-1, 8, _LANE), axis=0)
            sy = sy + jnp.sum(yg.reshape(-1, 8, _LANE), axis=0)
        tp_acc[...] = tp
        sx_acc[...] = sx
        sy_acc[...] = sy

    # (gchunk > num_chunks - 1 only happens for clamped filler chunks when
    #  num_chunks % splits != 0; those steps accumulate nothing.)

    @pl.when(c == chunks_per_split - 1)
    def _finalize():
        # One cross-lane XLU reduce per (sample, split), not per chunk.
        tp_out[...] = jnp.sum(tp_acc[...]).reshape(1, 1).astype(tp_out.dtype)
        sx_out[...] = jnp.sum(sx_acc[...]).reshape(1, 1).astype(sx_out.dtype)
        sy_out[...] = jnp.sum(sy_acc[...]).reshape(1, 1).astype(sy_out.dtype)


def _vmem_budget():
    """Returns (per-input block target bytes, scoped-VMEM limit cap) per chip gen."""
    try:
        cap = int(pltpu.get_tpu_info().vmem_capacity_bytes)
    except Exception:
        cap = 64 * 1024 * 1024  # conservative (v7x-sized) fallback
    if cap >= 96 * 1024 * 1024:
        # v5e / v6e: 128 MiB physical VMEM -> 8 MiB blocks, up to 80 MiB scoped.
        return 8 * 1024 * 1024, 80 * 1024 * 1024
    # v7x: 64 MiB per TensorCore -> 4 MiB blocks, keep scoped limit <= 48 MiB.
    return 4 * 1024 * 1024, 48 * 1024 * 1024


def soft_dice_loss(logits, targets, *, smooth=1.0, tile_rows=None):
    """SoftDiceLoss forward. logits/targets: (B, ...) arrays. Returns f32 scalar."""
    B = logits.shape[0]
    x = logits.reshape(B, -1)   # native dtype: no wrapper upcast
    y = targets.reshape(B, -1)
    N = x.shape[1]

    # The flattened axis must be viewable as (rows, 128). When 128 | N this is
    # a free reshape; otherwise fall back to a zero pad (exact for all 3 sums).
    pad = (-N) % _LANE
    if pad:
        # TODO(synk): the pad costs one extra HBM read+write pass; a zero-copy
        # alternative would need a 1-D-layout kernel path (a prefix slice or
        # reshape of a non-multiple-of-128 row is itself a full copy in XLA).
        x = jnp.pad(x, ((0, 0), (0, pad)))
        y = jnp.pad(y, ((0, 0), (0, pad)))
    R = (N + pad) // _LANE
    x = x.reshape(B, R, _LANE)
    y = y.reshape(B, R, _LANE)

    # Block sizing: ~4 MiB (v7x) / ~8 MiB (v5e/v6e) per input block so the
    # ~0.35 us per-grid-step overhead stays well under the block DMA time.
    itemsize = max(jnp.dtype(x.dtype).itemsize, jnp.dtype(y.dtype).itemsize)
    block_target, vmem_cap_limit = _vmem_budget()
    if tile_rows is None:
        tile_rows = block_target // (_LANE * int(itemsize))
    tr = max(8, (int(tile_rows) // 8) * 8)
    tr = min(tr, -(-R // 8) * 8)          # no bigger than one (padded) sample
    if tr >= _GROUP:
        tr = (tr // _GROUP) * _GROUP      # whole number of inner groups
        group = _GROUP
    else:
        group = tr                        # single inner group
    num_chunks = -(-R // tr)
    tail_rows = R - (num_chunks - 1) * tr

    # Split the reduction axis in two for odd batch sizes so both v7x
    # TensorCores get work (negligible cost on single-TC v5e/v6e).
    splits = 2 if (B % 2 == 1 and num_chunks >= 2) else 1
    cps = -(-num_chunks // splits)        # chunks per split

    # vmem limit scales with the (double-buffered, 2-input) block footprint.
    block_bytes = tr * _LANE * int(itemsize)
    vmem_limit = int(min(max(4 * block_bytes + (8 << 20), 32 << 20),
                         vmem_cap_limit))

    if splits == 1:
        def in_index(i, c):
            return (i, c, 0)
    else:
        def in_index(i, c):
            b = i // splits
            g = jnp.minimum((i % splits) * cps + c, num_chunks - 1)
            return (b, g, 0)

    kernel = functools.partial(
        _soft_dice_kernel,
        splits=int(splits), chunks_per_split=int(cps),
        num_chunks=int(num_chunks), tile_rows=int(tr),
        group_rows=int(group), tail_rows=int(tail_rows))

    part = jax.ShapeDtypeStruct((B * splits, 1, 1), jnp.float32)
    tp_p, sx_p, sy_p = pl.pallas_call(
        kernel,
        out_shape=(part, part, part),
        grid_spec=pltpu.PrefetchScalarGridSpec(
            num_scalar_prefetch=0,
            grid=(B * splits, cps),
            in_specs=[
                pl.BlockSpec((None, tr, _LANE), in_index),
                pl.BlockSpec((None, tr, _LANE), in_index),
            ],
            out_specs=(
                pl.BlockSpec((None, 1, 1), lambda i, c: (i, 0, 0)),
                pl.BlockSpec((None, 1, 1), lambda i, c: (i, 0, 0)),
                pl.BlockSpec((None, 1, 1), lambda i, c: (i, 0, 0)),
            ),
            scratch_shapes=[
                pltpu.VMEM((8, _LANE), jnp.float32),   # sum(x*y) lane partials
                pltpu.VMEM((8, _LANE), jnp.float32),   # sum(x)   lane partials
                pltpu.VMEM((8, _LANE), jnp.float32),   # sum(y)   lane partials
            ],
        ),
        compiler_params=pltpu.CompilerParams(
            dimension_semantics=("parallel", "arbitrary"),
            vmem_limit_bytes=vmem_limit,
        ),
    )(x, y)

    # Tiny epilogue: combine split partials and form the Dice score / loss.
    tp = tp_p[:, 0, 0].reshape(B, splits).sum(axis=1)
    sx = sx_p[:, 0, 0].reshape(B, splits).sum(axis=1)
    sy = sy_p[:, 0, 0].reshape(B, splits).sum(axis=1)
    score = 2.0 * (tp + smooth) / (sx + sy + smooth)
    return (1.0 - jnp.sum(score) / B).astype(jnp.float32)


def soft_dice_loss_ref(logits, targets, smooth=1.0):
    B = logits.shape[0]
    m1 = logits.reshape(B, -1).astype(jnp.float32)
    m2 = targets.reshape(B, -1).astype(jnp.float32)
    inter = jnp.sum(m1 * m2, axis=1)
    score = 2.0 * (inter + smooth) / (jnp.sum(m1, axis=1) + jnp.sum(m2, axis=1) + smooth)
    return 1.0 - jnp.sum(score) / B


if __name__ == "__main__":
    k1, k2, k3, k4 = jax.random.split(jax.random.PRNGKey(0), 4)

    # Primary config: small NCHW segmentation-style prediction/target pair.
    B, C, H, W = 2, 4, 16, 16
    logits = jax.random.uniform(k1, (B, C, H, W), dtype=jnp.float32)
    targets = (jax.random.uniform(k2, (B, C, H, W)) > 0.5).astype(jnp.float32)
    loss = jax.block_until_ready(soft_dice_loss(logits, targets))
    ref = soft_dice_loss_ref(logits, targets)
    assert jnp.allclose(loss, ref, rtol=1e-5, atol=1e-5), (loss, ref)

    # Secondary config: odd batch, flattened size not a multiple of 128, and a
    # small tile so several chunks are needed -> exercises the TensorCore
    # split, the clamped filler chunk and the masked ragged-tail path.
    B2, C2, H2, W2 = 1, 3, 120, 100
    logits2 = jax.random.uniform(k3, (B2, C2, H2, W2), dtype=jnp.float32)
    targets2 = (jax.random.uniform(k4, (B2, C2, H2, W2)) > 0.5).astype(jnp.float32)
    loss2 = jax.block_until_ready(soft_dice_loss(logits2, targets2, tile_rows=64))
    ref2 = soft_dice_loss_ref(logits2, targets2)
    assert jnp.allclose(loss2, ref2, rtol=1e-4, atol=1e-4), (loss2, ref2)

    print("KERNEL_OK")
</pallas_src>

<mosaic_0001>
module attributes {stable_mosaic.version = 11 : i64} {
  func.func @_soft_dice_kernel(%arg0: i32, %arg1: i32, %arg2: memref<1x8x128xf32, #tpu.memory_space<vmem>>, %arg3: memref<1x8x128xf32, #tpu.memory_space<vmem>>, %arg4: memref<1x1x1xf32, #tpu.memory_space<vmem>>, %arg5: memref<1x1x1xf32, #tpu.memory_space<vmem>>, %arg6: memref<1x1x1xf32, #tpu.memory_space<vmem>>, %arg7: memref<8x128xf32, #tpu.memory_space<vmem>>, %arg8: memref<8x128xf32, #tpu.memory_space<vmem>>, %arg9: memref<8x128xf32, #tpu.memory_space<vmem>>) attributes {dimension_semantics = [#tpu.dimension_semantics<parallel>, #tpu.dimension_semantics<arbitrary>], iteration_bounds = array<i64: 2, 1>, scalar_prefetch = 0 : i64, scratch_operands = 3 : i64, tpu.core_type = #tpu.core_type<tc>, window_params = [{transform_indices = @transform_0, window_bounds = array<i64: 1, 8, 128>}, {transform_indices = @transform_1, window_bounds = array<i64: 1, 8, 128>}, {transform_indices = @transform_2, window_bounds = array<i64: 1, 1, 1>}, {transform_indices = @transform_3, window_bounds = array<i64: 1, 1, 1>}, {transform_indices = @transform_4, window_bounds = array<i64: 1, 1, 1>}]} {
    %c0_i32 = arith.constant 0 : i32
    %0 = arith.cmpi eq, %arg1, %c0_i32 : i32
    %1 = arith.extui %0 : i1 to i32
    %c0_i32_0 = arith.constant 0 : i32
    %2 = arith.cmpi ne, %1, %c0_i32_0 : i32
    scf.if %2 {
      %cst = arith.constant 0.000000e+00 : f32
      %12 = vector.broadcast %cst : f32 to vector<8x128xf32>
      %c0 = arith.constant 0 : index
      %c0_7 = arith.constant 0 : index
      %13 = vector.load %arg7[%c0, %c0_7] : memref<8x128xf32, #tpu.memory_space<vmem>>, vector<8x128xf32>
      tpu.vector_store %arg7[%c0, %c0_7], %12 {strides = array<i32>} : memref<8x128xf32, #tpu.memory_space<vmem>>, vector<8x128xf32>,
      %cst_8 = arith.constant 0.000000e+00 : f32
      %14 = vector.broadcast %cst_8 : f32 to vector<8x128xf32>
      %c0_9 = arith.constant 0 : index
      %c0_10 = arith.constant 0 : index
      %15 = vector.load %arg8[%c0_9, %c0_10] : memref<8x128xf32, #tpu.memory_space<vmem>>, vector<8x128xf32>
      tpu.vector_store %arg8[%c0_9, %c0_10], %14 {strides = array<i32>} : memref<8x128xf32, #tpu.memory_space<vmem>>, vector<8x128xf32>,
      %cst_11 = arith.constant 0.000000e+00 : f32
      %16 = vector.broadcast %cst_11 : f32 to vector<8x128xf32>
      %c0_12 = arith.constant 0 : index
      %c0_13 = arith.constant 0 : index
      %17 = vector.load %arg9[%c0_12, %c0_13] : memref<8x128xf32, #tpu.memory_space<vmem>>, vector<8x128xf32>
      tpu.vector_store %arg9[%c0_12, %c0_13], %16 {strides = array<i32>} : memref<8x128xf32, #tpu.memory_space<vmem>>, vector<8x128xf32>,
    } else {
    }
    %c0_i32_1 = arith.constant 0 : i32
    %3 = arith.cmpi slt, %arg1, %c0_i32_1 : i32
    %4 = arith.extui %3 : i1 to i32
    %c0_i32_2 = arith.constant 0 : i32
    %5 = arith.cmpi ne, %4, %c0_i32_2 : i32
    scf.if %5 {
      %c0 = arith.constant 0 : index
      %c0_7 = arith.constant 0 : index
      %12 = vector.load %arg7[%c0, %c0_7] : memref<8x128xf32, #tpu.memory_space<vmem>>, vector<8x128xf32>
      %c0_8 = arith.constant 0 : index
      %c0_9 = arith.constant 0 : index
      %13 = vector.load %arg8[%c0_8, %c0_9] : memref<8x128xf32, #tpu.memory_space<vmem>>, vector<8x128xf32>
      %c0_10 = arith.constant 0 : index
      %c0_11 = arith.constant 0 : index
      %14 = vector.load %arg9[%c0_10, %c0_11] : memref<8x128xf32, #tpu.memory_space<vmem>>, vector<8x128xf32>
      %c0_i32_12 = arith.constant 0 : i32
      %c8_i32 = arith.constant 8 : i32
      %15 = arith.muli %c0_i32_12, %c8_i32 : i32
      %16 = tpu.assume_multiple %15, 8 : i32
      %c0_13 = arith.constant 0 : index
      %17 = arith.index_cast %16 : i32 to index
      %c0_14 = arith.constant 0 : index
      %18 = vector.load %arg2[%c0_13, %17, %c0_14] : memref<1x8x128xf32, #tpu.memory_space<vmem>>, vector<1x8x128xf32>
      %19 = vector.shape_cast %18 : vector<1x8x128xf32> to vector<8x128xf32>
      %c0_15 = arith.constant 0 : index
      %20 = arith.index_cast %16 : i32 to index
      %c0_16 = arith.constant 0 : index
      %21 = vector.load %arg3[%c0_15, %20, %c0_16] : memref<1x8x128xf32, #tpu.memory_space<vmem>>, vector<1x8x128xf32>
      %22 = vector.shape_cast %21 : vector<1x8x128xf32> to vector<8x128xf32>
      %23 = arith.mulf %19, %22 : vector<8x128xf32>
      %24 = vector.shape_cast %23 : vector<8x128xf32> to vector<1x8x128xf32>
      %cst = arith.constant dense<0.000000e+00> : vector<8x128xf32>
      %25 = vector.multi_reduction <add>, %24, %cst [0] : vector<1x8x128xf32> to vector<8x128xf32>
      %26 = arith.addf %12, %25 : vector<8x128xf32>
      %27 = vector.shape_cast %19 : vector<8x128xf32> to vector<1x8x128xf32>
      %cst_17 = arith.constant dense<0.000000e+00> : vector<8x128xf32>
      %28 = vector.multi_reduction <add>, %27, %cst_17 [0] : vector<1x8x128xf32> to vector<8x128xf32>
      %29 = arith.addf %13, %28 : vector<8x128xf32>
      %30 = vector.shape_cast %22 : vector<8x128xf32> to vector<1x8x128xf32>
      %cst_18 = arith.constant dense<0.000000e+00> : vector<8x128xf32>
      %31 = vector.multi_reduction <add>, %30, %cst_18 [0] : vector<1x8x128xf32> to vector<8x128xf32>
      %32 = arith.addf %14, %31 : vector<8x128xf32>
      %c1_i32 = arith.constant 1 : i32
      %c0_19 = arith.constant 0 : index
      %c0_20 = arith.constant 0 : index
      %33 = vector.load %arg7[%c0_19, %c0_20] : memref<8x128xf32, #tpu.memory_space<vmem>>, vector<8x128xf32>
      tpu.vector_store %arg7[%c0_19, %c0_20], %26 {strides = array<i32>} : memref<8x128xf32, #tpu.memory_space<vmem>>, vector<8x128xf32>,
      %c0_21 = arith.constant 0 : index
      %c0_22 = arith.constant 0 : index
      %34 = vector.load %arg8[%c0_21, %c0_22] : memref<8x128xf32, #tpu.memory_space<vmem>>, vector<8x128xf32>
      tpu.vector_store %arg8[%c0_21, %c0_22], %29 {strides = array<i32>} : memref<8x128xf32, #tpu.memory_space<vmem>>, vector<8x128xf32>,
      %c0_23 = arith.constant 0 : index
      %c0_24 = arith.constant 0 : index
      %35 = vector.load %arg9[%c0_23, %c0_24] : memref<8x128xf32, #tpu.memory_space<vmem>>, vector<8x128xf32>
      tpu.vector_store %arg9[%c0_23, %c0_24], %32 {strides = array<i32>} : memref<8x128xf32, #tpu.memory_space<vmem>>, vector<8x128xf32>,
    } else {
    }
    %c0_i32_3 = arith.constant 0 : i32
    %6 = arith.cmpi eq, %arg1, %c0_i32_3 : i32
    %7 = arith.extui %6 : i1 to i32
    %c0_i32_4 = arith.constant 0 : i32
    %8 = arith.cmpi ne, %7, %c0_i32_4 : i32
    scf.if %8 {
      %c0 = arith.constant 0 : index
      %c0_7 = arith.constant 0 : index
      %12 = vector.load %arg7[%c0, %c0_7] : memref<8x128xf32, #tpu.memory_space<vmem>>, vector<8x128xf32>
      %c0_8 = arith.constant 0 : index
      %c0_9 = arith.constant 0 : index
      %13 = vector.load %arg8[%c0_8, %c0_9] : memref<8x128xf32, #tpu.memory_space<vmem>>, vector<8x128xf32>
      %c0_10 = arith.constant 0 : index
      %c0_11 = arith.constant 0 : index
      %14 = vector.load %arg9[%c0_10, %c0_11] : memref<8x128xf32, #tpu.memory_space<vmem>>, vector<8x128xf32>
      %c0_i32_12 = arith.constant 0 : i32
      %c8_i32 = arith.constant 8 : i32
      %15 = arith.muli %c0_i32_12, %c8_i32 : i32
      %16 = tpu.assume_multiple %15, 8 : i32
      %c0_13 = arith.constant 0 : index
      %17 = arith.index_cast %16 : i32 to index
      %c0_14 = arith.constant 0 : index
      %18 = vector.load %arg2[%c0_13, %17, %c0_14] : memref<1x8x128xf32, #tpu.memory_space<vmem>>, vector<1x8x128xf32>
      %19 = vector.shape_cast %18 : vector<1x8x128xf32> to vector<8x128xf32>
      %c0_15 = arith.constant 0 : index
      %20 = arith.index_cast %16 : i32 to index
      %c0_16 = arith.constant 0 : index
      %21 = vector.load %arg3[%c0_15, %20, %c0_16] : memref<1x8x128xf32, #tpu.memory_space<vmem>>, vector<1x8x128xf32>
      %22 = vector.shape_cast %21 : vector<1x8x128xf32> to vector<8x128xf32>
      %23 = arith.mulf %19, %22 : vector<8x128xf32>
      %24 = vector.shape_cast %23 : vector<8x128xf32> to vector<1x8x128xf32>
      %cst = arith.constant dense<0.000000e+00> : vector<8x128xf32>
      %25 = vector.multi_reduction <add>, %24, %cst [0] : vector<1x8x128xf32> to vector<8x128xf32>
      %26 = arith.addf %12, %25 : vector<8x128xf32>
      %27 = vector.shape_cast %19 : vector<8x128xf32> to vector<1x8x128xf32>
      %cst_17 = arith.constant dense<0.000000e+00> : vector<8x128xf32>
      %28 = vector.multi_reduction <add>, %27, %cst_17 [0] : vector<1x8x128xf32> to vector<8x128xf32>
      %29 = arith.addf %13, %28 : vector<8x128xf32>
      %30 = vector.shape_cast %22 : vector<8x128xf32> to vector<1x8x128xf32>
      %cst_18 = arith.constant dense<0.000000e+00> : vector<8x128xf32>
      %31 = vector.multi_reduction <add>, %30, %cst_18 [0] : vector<1x8x128xf32> to vector<8x128xf32>
      %32 = arith.addf %14, %31 : vector<8x128xf32>
      %c1_i32 = arith.constant 1 : i32
      %c0_19 = arith.constant 0 : index
      %c0_20 = arith.constant 0 : index
      %33 = vector.load %arg7[%c0_19, %c0_20] : memref<8x128xf32, #tpu.memory_space<vmem>>, vector<8x128xf32>
      tpu.vector_store %arg7[%c0_19, %c0_20], %26 {strides = array<i32>} : memref<8x128xf32, #tpu.memory_space<vmem>>, vector<8x128xf32>,
      %c0_21 = arith.constant 0 : index
      %c0_22 = arith.constant 0 : index
      %34 = vector.load %arg8[%c0_21, %c0_22] : memref<8x128xf32, #tpu.memory_space<vmem>>, vector<8x128xf32>
      tpu.vector_store %arg8[%c0_21, %c0_22], %29 {strides = array<i32>} : memref<8x128xf32, #tpu.memory_space<vmem>>, vector<8x128xf32>,
      %c0_23 = arith.constant 0 : index
      %c0_24 = arith.constant 0 : index
      %35 = vector.load %arg9[%c0_23, %c0_24] : memref<8x128xf32, #tpu.memory_space<vmem>>, vector<8x128xf32>
      tpu.vector_store %arg9[%c0_23, %c0_24], %32 {strides = array<i32>} : memref<8x128xf32, #tpu.memory_space<vmem>>, vector<8x128xf32>,
    } else {
    }
    %c0_i32_5 = arith.constant 0 : i32
    %9 = arith.cmpi eq, %arg1, %c0_i32_5 : i32
    %10 = arith.extui %9 : i1 to i32
    %c0_i32_6 = arith.constant 0 : i32
    %11 = arith.cmpi ne, %10, %c0_i32_6 : i32
    scf.if %11 {
      %c0 = arith.constant 0 : index
      %c0_7 = arith.constant 0 : index
      %12 = vector.load %arg7[%c0, %c0_7] : memref<8x128xf32, #tpu.memory_space<vmem>>, vector<8x128xf32>
      %13 = vector.shape_cast %12 : vector<8x128xf32> to vector<1x8x128xf32>
      %cst = arith.constant dense<0.000000e+00> : vector<1xf32>
      %14 = vector.multi_reduction <add>, %13, %cst [1, 2] : vector<1x8x128xf32> to vector<1xf32>
      %15 = vector.shape_cast %14 : vector<1xf32> to vector<1x1x1xf32>
      %16 = vector.extract %15[0, 0, 0] : f32 from vector<1x1x1xf32>
      %17 = vector.broadcast %16 : f32 to vector<1x1xf32>
      %c0_8 = arith.constant 0 : index
      %c0_9 = arith.constant 0 : index
      %c0_10 = arith.constant 0 : index
      %18 = vector.load %arg4[%c0_8, %c0_9, %c0_10] : memref<1x1x1xf32, #tpu.memory_space<vmem>>, vector<1x1x1xf32>
      %19 = vector.shape_cast %18 : vector<1x1x1xf32> to vector<1x1xf32>
      %20 = vector.shape_cast %17 : vector<1x1xf32> to vector<1x1x1xf32>
      tpu.vector_store %arg4[%c0_8, %c0_9, %c0_10], %20 {strides = array<i32>} : memref<1x1x1xf32, #tpu.memory_space<vmem>>, vector<1x1x1xf32>,
      %c0_11 = arith.constant 0 : index
      %c0_12 = arith.constant 0 : index
      %21 = vector.load %arg8[%c0_11, %c0_12] : memref<8x128xf32, #tpu.memory_space<vmem>>, vector<8x128xf32>
      %22 = vector.shape_cast %21 : vector<8x128xf32> to vector<1x8x128xf32>
      %cst_13 = arith.constant dense<0.000000e+00> : vector<1xf32>
      %23 = vector.multi_reduction <add>, %22, %cst_13 [1, 2] : vector<1x8x128xf32> to vector<1xf32>
      %24 = vector.shape_cast %23 : vector<1xf32> to vector<1x1x1xf32>
      %25 = vector.extract %24[0, 0, 0] : f32 from vector<1x1x1xf32>
      %26 = vector.broadcast %25 : f32 to vector<1x1xf32>
      %c0_14 = arith.constant 0 : index
      %c0_15 = arith.constant 0 : index
      %c0_16 = arith.constant 0 : index
      %27 = vector.load %arg5[%c0_14, %c0_15, %c0_16] : memref<1x1x1xf32, #tpu.memory_space<vmem>>, vector<1x1x1xf32>
      %28 = vector.shape_cast %27 : vector<1x1x1xf32> to vector<1x1xf32>
      %29 = vector.shape_cast %26 : vector<1x1xf32> to vector<1x1x1xf32>
      tpu.vector_store %arg5[%c0_14, %c0_15, %c0_16], %29 {strides = array<i32>} : memref<1x1x1xf32, #tpu.memory_space<vmem>>, vector<1x1x1xf32>,
      %c0_17 = arith.constant 0 : index
      %c0_18 = arith.constant 0 : index
      %30 = vector.load %arg9[%c0_17, %c0_18] : memref<8x128xf32, #tpu.memory_space<vmem>>, vector<8x128xf32>
      %31 = vector.shape_cast %30 : vector<8x128xf32> to vector<1x8x128xf32>
      %cst_19 = arith.constant dense<0.000000e+00> : vector<1xf32>
      %32 = vector.multi_reduction <add>, %31, %cst_19 [1, 2] : vector<1x8x128xf32> to vector<1xf32>
      %33 = vector.shape_cast %32 : vector<1xf32> to vector<1x1x1xf32>
      %34 = vector.extract %33[0, 0, 0] : f32 from vector<1x1x1xf32>
      %35 = vector.broadcast %34 : f32 to vector<1x1xf32>
      %c0_20 = arith.constant 0 : index
      %c0_21 = arith.constant 0 : index
      %c0_22 = arith.constant 0 : index
      %36 = vector.load %arg6[%c0_20, %c0_21, %c0_22] : memref<1x1x1xf32, #tpu.memory_space<vmem>>, vector<1x1x1xf32>
      %37 = vector.shape_cast %36 : vector<1x1x1xf32> to vector<1x1xf32>
      %38 = vector.shape_cast %35 : vector<1x1xf32> to vector<1x1x1xf32>
      tpu.vector_store %arg6[%c0_20, %c0_21, %c0_22], %38 {strides = array<i32>} : memref<1x1x1xf32, #tpu.memory_space<vmem>>, vector<1x1x1xf32>,
    } else {
    }
    return
  }
  func.func @transform_0(%arg0: i32, %arg1: i32) -> (i32, i32, i32) {
    %c0_i32 = arith.constant 0 : i32
    %c0_i32_0 = arith.constant 0 : i32
    return %arg0, %arg1, %c0_i32 : i32, i32, i32
  }
  func.func @transform_1(%arg0: i32, %arg1: i32) -> (i32, i32, i32) {
    %c0_i32 = arith.constant 0 : i32
    %c0_i32_0 = arith.constant 0 : i32
    return %arg0, %arg1, %c0_i32 : i32, i32, i32
  }
  func.func @transform_2(%arg0: i32, %arg1: i32) -> (i32, i32, i32) {
    %c0_i32 = arith.constant 0 : i32
    %c0_i32_0 = arith.constant 0 : i32
    %c0_i32_1 = arith.constant 0 : i32
    return %arg0, %c0_i32, %c0_i32_0 : i32, i32, i32
  }
  func.func @transform_3(%arg0: i32, %arg1: i32) -> (i32, i32, i32) {
    %c0_i32 = arith.constant 0 : i32
    %c0_i32_0 = arith.constant 0 : i32
    %c0_i32_1 = arith.constant 0 : i32
    return %arg0, %c0_i32, %c0_i32_0 : i32, i32, i32
  }
  func.func @transform_4(%arg0: i32, %arg1: i32) -> (i32, i32, i32) {
    %c0_i32 = arith.constant 0 : i32
    %c0_i32_0 = arith.constant 0 : i32
    %c0_i32_1 = arith.constant 0 : i32
    return %arg0, %c0_i32, %c0_i32_0 : i32, i32, i32
  }
}

</mosaic_0001>

<llo_original>
// kernel: tpu_custom_call.1
$region0: #{tpu_custom_call.1}
  #allocation0 [shape = 'u32[]', space=smem, size = 0x4, offset = 0x4, fixed_abs, tag = 'smem constant byte address 0x4 - core index']
  #allocation1 [shape = 'u32[144,128]{1,0:T(1,128)}', space=vmem, size = 0x12000, scoped, tag = 'internal scratch']
  #allocation2 [shape = 'f32[8,128]{1,0:T(8,128)}', space=vmem, size = 0x1000, scoped, tag = 'scratch operand']
  #allocation3 [shape = 'f32[8,128]{1,0:T(8,128)}', space=vmem, size = 0x1000, scoped, tag = 'scratch operand']
  #allocation4 [shape = 'f32[8,128]{1,0:T(8,128)}', space=vmem, size = 0x1000, scoped, tag = 'scratch operand']
  %s0 = inlined_call_operand.hbm [shape: f32[2,8,128], index: 0, kind: input, shape index: {}]
  %s1 = inlined_call_operand.hbm [shape: f32[2,8,128], index: 1, kind: input, shape index: {}]
  %s2 = inlined_call_operand.vmem [shape: f32[2,1,1], index: 2, kind: output, shape index: {0}]
  %s3 = inlined_call_operand.vmem [shape: f32[2,1,1], index: 3, kind: output, shape index: {1}]
  %s4 = inlined_call_operand.vmem [shape: f32[2,1,1], index: 4, kind: output, shape index: {2}]
  %5 = xla_tuple %s2, %s3, %s4
  %s6 = sld [smem:[#allocation0]]
  $region77: #{tpu_custom_call.1} parent=0
    _
  %s8 = ssub.s32 1, %s6
  %s9 = scalar_select 0, %s8, %s6
  $region1: #{tpu_custom_call.1} parent=0
    #allocation5 [shape = 'u8[8192]{0}', space=vmem, size = 0x2000, scoped, tag = 'input window, operand 0']
    #allocation6 [shape = 's32[2]{0}', space=sflag, size = 0x8, scoped, tag = 'scoped memory for tpu_custom_call.1']
    #allocation7 [shape = 'u8[8192]{0}', space=vmem, size = 0x2000, scoped, tag = 'input window, operand 1']
    #allocation8 [shape = 's32[2]{0}', space=sflag, size = 0x8, scoped, tag = 'scoped memory for tpu_custom_call.1']
    %10 = vsyncpa [#allocation6], 0
    %s11 = scalar_lea.sflag [#allocation6], 1
    %12 = vsyncpa %s11, 0
    %13 = vsyncpa [#allocation8], 0
    %s14 = scalar_lea.sflag [#allocation8], 1
    %15 = vsyncpa %s14, 0
    loop: start=0, step=1, limit=4
    $region2: #{tpu_custom_call.1} parent=1 // loop_pre_header
      _
    $region3: #{tpu_custom_call.1} parent=1 // loop_header
      %s17 = sphi 0, %s21
      %p18 = scmp.ge.s32.totalorder %s17, 4
      %s24 = sphi 0, %s36
      %s25 = sphi 0, %s32
      %s26 = sphi 0, %s24
      %s27 = sphi 0, %s25
      %s28 = sphi 0, %s26
      %s29 = sphi 0, %s27
      %s41 = sphi 0, %s43
      %s44 = sphi 0, %s41
      %s45 = sphi 0, %s44
      %s61 = sphi 0, %s45
      %s69 = sphi 0, %s71
      %s72 = sphi 0, %s69
      %s73 = sphi 0, %s72
      %s89 = sphi 0, %s73
      %s95 = sphi 0, %s97
      %s98 = sphi 0, %s95
      %s99 = sphi 0, %s98
      %s115 = sphi 0, %s99
      %s121 = sphi 0, %s123
      %s124 = sphi 0, %s121
      %s125 = sphi 0, %s124
      %s141 = sphi 0, %s125
      %s147 = sphi 0, %s149
      %s150 = sphi 0, %s147
      %s151 = sphi 0, %s150
      %s167 = sphi 0, %s151
    $region4: #{tpu_custom_call.1} parent=1 // loop_header_branch
      %20 = sbr.rel (%p18) target = $region8
    $region5: #{tpu_custom_call.1} parent=1 // loop_body
      %s22 = ssub.s32 %s17, 1
      %s23 = ssub.s32 %s17, 2
      %s30 = sadd.s32 1, %s25
      %p31 = scmp.ge.s32.totalorder %s30, 1
      %s32 = scalar_select %p31, 0, %s30
      %s33 = sadd.s32 1, %s24
      %s34 = scalar_select %p31, %s33, %s24
      %p35 = scmp.ge.s32.totalorder %s34, 2
      %s36 = scalar_select %p35, 0, %s34
      %s37 = ssub.s32 %s24, %s36
      %s38 = ssub.s32 %s25, %s32
      %s39 = sor.u32 %s37, %s38
      %p40 = scmp.eq.s32.totalorder %s39, 0
      %s42 = sadd.s32 %s41, 1
      %s43 = scalar_select %p40, %s41, %s42
      %p46 = pneg %p40
      %p47 = scmp.eq.s32.totalorder %s17, 1
      %p48 = por %p46, %p47
      %p49 = scmp.ne.s32.totalorder %s41, %s44
      %p50 = scmp.eq.s32.totalorder %s17, 0
      %p51 = por %p49, %p50
      %p52 = scmp.ne.s32.totalorder %s41, %s44
      %p53 = scmp.eq.s32.totalorder %s22, 1
      %p54 = por %p52, %p53
      %p55 = scmp.ne.s32.totalorder %s44, %s45
      %p56 = scmp.eq.s32.totalorder %s22, 0
      %p57 = por %p55, %p56
      %p58 = scmp.ne.s32.totalorder %s44, %s45
      %p59 = scmp.eq.s32.totalorder %s23, 1
      %p60 = por %p58, %p59
      %p62 = scmp.ne.s32.totalorder %s45, %s61
      %p63 = scmp.eq.s32.totalorder %s23, 0
      %p64 = por %p62, %p63
      %s65 = ssub.s32 %s24, %s36
      %s66 = ssub.s32 %s25, %s32
      %s67 = sor.u32 %s65, %s66
      %p68 = scmp.eq.s32.totalorder %s67, 0
      %s70 = sadd.s32 %s69, 1
      %s71 = scalar_select %p68, %s69, %s70
      %p74 = pneg %p68
      %p75 = scmp.eq.s32.totalorder %s17, 1
      %p76 = por %p74, %p75
      %p77 = scmp.ne.s32.totalorder %s69, %s72
      %p78 = scmp.eq.s32.totalorder %s17, 0
      %p79 = por %p77, %p78
      %p80 = scmp.ne.s32.totalorder %s69, %s72
      %p81 = scmp.eq.s32.totalorder %s22, 1
      %p82 = por %p80, %p81
      %p83 = scmp.ne.s32.totalorder %s72, %s73
      %p84 = scmp.eq.s32.totalorder %s22, 0
      %p85 = por %p83, %p84
      %p86 = scmp.ne.s32.totalorder %s72, %s73
      %p87 = scmp.eq.s32.totalorder %s23, 1
      %p88 = por %p86, %p87
      %p90 = scmp.ne.s32.totalorder %s73, %s89
      %p91 = scmp.eq.s32.totalorder %s23, 0
      %p92 = por %p90, %p91
      %s93 = ssub.s32 %s24, %s36
      %p94 = scmp.eq.s32.totalorder %s93, 0
      %s96 = sadd.s32 %s95, 1
      %s97 = scalar_select %p94, %s95, %s96
      %p100 = pneg %p94
      %p101 = scmp.eq.s32.totalorder %s17, 1
      %p102 = por %p100, %p101
      %p103 = scmp.ne.s32.totalorder %s95, %s98
      %p104 = scmp.eq.s32.totalorder %s17, 0
      %p105 = por %p103, %p104
      %p106 = scmp.ne.s32.totalorder %s95, %s98
      %p107 = scmp.eq.s32.totalorder %s22, 1
      %p108 = por %p106, %p107
      %p109 = scmp.ne.s32.totalorder %s98, %s99
      %p110 = scmp.eq.s32.totalorder %s22, 0
      %p111 = por %p109, %p110
      %p112 = scmp.ne.s32.totalorder %s98, %s99
      %p113 = scmp.eq.s32.totalorder %s23, 1
      %p114 = por %p112, %p113
      %p116 = scmp.ne.s32.totalorder %s99, %s115
      %p117 = scmp.eq.s32.totalorder %s23, 0
      %p118 = por %p116, %p117
      %s119 = ssub.s32 %s24, %s36
      %p120 = scmp.eq.s32.totalorder %s119, 0
      %s122 = sadd.s32 %s121, 1
      %s123 = scalar_select %p120, %s121, %s122
      %p126 = pneg %p120
      %p127 = scmp.eq.s32.totalorder %s17, 1
      %p128 = por %p126, %p127
      %p129 = scmp.ne.s32.totalorder %s121, %s124
      %p130 = scmp.eq.s32.totalorder %s17, 0
      %p131 = por %p129, %p130
      %p132 = scmp.ne.s32.totalorder %s121, %s124
      %p133 = scmp.eq.s32.totalorder %s22, 1
      %p134 = por %p132, %p133
      %p135 = scmp.ne.s32.totalorder %s124, %s125
      %p136 = scmp.eq.s32.totalorder %s22, 0
      %p137 = por %p135, %p136
      %p138 = scmp.ne.s32.totalorder %s124, %s125
      %p139 = scmp.eq.s32.totalorder %s23, 1
      %p140 = por %p138, %p139
      %p142 = scmp.ne.s32.totalorder %s125, %s141
      %p143 = scmp.eq.s32.totalorder %s23, 0
      %p144 = por %p142, %p143
      %s145 = ssub.s32 %s24, %s36
      %p146 = scmp.eq.s32.totalorder %s145, 0
      %s148 = sadd.s32 %s147, 1
      %s149 = scalar_select %p146, %s147, %s148
      %p152 = pneg %p146
      %p153 = scmp.eq.s32.totalorder %s17, 1
      %p154 = por %p152, %p153
      %p155 = scmp.ne.s32.totalorder %s147, %s150
      %p156 = scmp.eq.s32.totalorder %s17, 0
      %p157 = por %p155, %p156
      %p158 = scmp.ne.s32.totalorder %s147, %s150
      %p159 = scmp.eq.s32.totalorder %s22, 1
      %p160 = por %p158, %p159
      %p161 = scmp.ne.s32.totalorder %s150, %s151
      %p162 = scmp.eq.s32.totalorder %s22, 0
      %p163 = por %p161, %p162
      %p164 = scmp.ne.s32.totalorder %s150, %s151
      %p165 = scmp.eq.s32.totalorder %s23, 1
      %p166 = por %p164, %p165
      %p168 = scmp.ne.s32.totalorder %s151, %s167
      %p169 = scmp.eq.s32.totalorder %s23, 0
      %p170 = por %p168, %p169
      %p171 = scmp.le.s32.totalorder 1, %s17
      %p172 = scmp.lt.s32.totalorder %s17, 3
      %p173 = pnand %p171, %p172
      %p174 = pneg %p173
      // Predicated region
      $region9: #{tpu_custom_call.1} parent=5 // pred_check
        _
      $region10: #{tpu_custom_call.1} parent=5 // pred_check_branch
        %176 = sbr.rel (%p173) target = $region12
      $region11: #{tpu_custom_call.1} parent=5 // pred_region
        %s177 = ssub.s32 %s17, 1
      $region12: #{tpu_custom_call.1} parent=5 // pred_fallthru
        _
      %p178 = scmp.lt.s32.totalorder %s17, 2
      // Predicated region
      $region13: #{tpu_custom_call.1} parent=5 // pred_check
        %p179 = pneg %p178
      $region14: #{tpu_custom_call.1} parent=5 // pred_check_branch
        %181 = sbr.rel (%p179) target = $region16
      $region15: #{tpu_custom_call.1} parent=5 // pred_region
        // Predicated region
        $region17: #{tpu_custom_call.1} parent=15 // pred_check
          %p182 = pneg %p51
        $region18: #{tpu_custom_call.1} parent=15 // pred_check_branch
          %184 = sbr.rel (%p182) target = $region20
        $region19: #{tpu_custom_call.1} parent=15 // pred_region
          %s185 = sand.u32 %s41, 1
          %s186 = scalar_lea.sflag [#allocation6], %s185
          %s187 = sand.u32 %s41, 1
          %s188 = smul.addr %s187, 8
          %s189 = scalar_lea.vmem [#allocation5], %s188
          %s191 = ssub.s32 128, 128
          %192 = vsyncadd %s186, %s191
          %s193 = sadd.s32 %s25, %s24
          %s194 = smul.addr %s193, 128
          %s195 = scalar_lea.hbm %s0, %s194
          %s197 = sshll.u32 %s189, 4
          %s198 = int_to_ptr.vmem [resolvable:$true] %s197
          %200 = dma.hbm_to_vmem [thread:$0]  %s195, 128, %s198, %s186
        $region20: #{tpu_custom_call.1} parent=15 // pred_fallthru
          _
        // Predicated region
        $region21: #{tpu_custom_call.1} parent=15 // pred_check
          %p201 = pneg %p79
        $region22: #{tpu_custom_call.1} parent=15 // pred_check_branch
          %203 = sbr.rel (%p201) target = $region24
        $region23: #{tpu_custom_call.1} parent=15 // pred_region
          %s204 = sand.u32 %s69, 1
          %s205 = scalar_lea.sflag [#allocation8], %s204
          %s206 = sand.u32 %s69, 1
          %s207 = smul.addr %s206, 8
          %s208 = scalar_lea.vmem [#allocation7], %s207
          %s210 = ssub.s32 128, 128
          %211 = vsyncadd %s205, %s210
          %s212 = sadd.s32 %s25, %s24
          %s213 = smul.addr %s212, 128
          %s214 = scalar_lea.hbm %s1, %s213
          %s216 = sshll.u32 %s208, 4
          %s217 = int_to_ptr.vmem [resolvable:$true] %s216
          %219 = dma.hbm_to_vmem [thread:$0]  %s214, 128, %s217, %s205
        $region24: #{tpu_custom_call.1} parent=15 // pred_fallthru
          _
      $region16: #{tpu_custom_call.1} parent=5 // pred_fallthru
        _
      %p220 = scmp.le.s32.totalorder 1, %s17
      %p221 = scmp.lt.s32.totalorder %s17, 3
      %p222 = pnand %p220, %p221
      %p223 = pneg %p222
      // Predicated region
      $region25: #{tpu_custom_call.1} parent=5 // pred_check
        _
      $region26: #{tpu_custom_call.1} parent=5 // pred_check_branch
        %225 = sbr.rel (%p222) target = $region28
      $region27: #{tpu_custom_call.1} parent=5 // pred_region
        %s226 = ssub.s32 %s17, 1
        %s227 = sand.u32 %s44, 1
        %s228 = scalar_lea.sflag [#allocation6], %s227
        %s229 = sand.u32 %s44, 1
        %s230 = smul.addr %s229, 8
        %s231 = scalar_lea.vmem [#allocation5], %s230
        // Predicated region
        $region29: #{tpu_custom_call.1} parent=27 // pred_check
          %p232 = pneg %p57
        $region30: #{tpu_custom_call.1} parent=27 // pred_check_branch
          %234 = sbr.rel (%p232) target = $region32
        $region31: #{tpu_custom_call.1} parent=27 // pred_region
          %235 = dma.done %s228, 128
        $region32: #{tpu_custom_call.1} parent=27 // pred_fallthru
          _
        %s236 = sand.u32 %s72, 1
        %s237 = scalar_lea.sflag [#allocation8], %s236
        %s238 = sand.u32 %s72, 1
        %s239 = smul.addr %s238, 8
        %s240 = scalar_lea.vmem [#allocation7], %s239
        // Predicated region
        $region33: #{tpu_custom_call.1} parent=27 // pred_check
          %p241 = pneg %p85
        $region34: #{tpu_custom_call.1} parent=27 // pred_check_branch
          %243 = sbr.rel (%p241) target = $region36
        $region35: #{tpu_custom_call.1} parent=27 // pred_region
          %244 = dma.done %s237, 128
        $region36: #{tpu_custom_call.1} parent=27 // pred_fallthru
          _
        %s245 = sand.u32 %s44, 1
        %s246 = scalar_lea.sflag [#allocation6], %s245
        %s247 = sand.u32 %s44, 1
        %s248 = smul.addr %s247, 8
        %s249 = scalar_lea.vmem [#allocation5], %s248
        %p250 = pneg %p57
        %p251 = pneg %p54
        %s252 = sand.u32 %s72, 1
        %s253 = scalar_lea.sflag [#allocation8], %s252
        %s254 = sand.u32 %s72, 1
        %s255 = smul.addr %s254, 8
        %s256 = scalar_lea.vmem [#allocation7], %s255
        %p257 = pneg %p85
        %p258 = pneg %p82
        %p259 = pneg %p111
        %p260 = pneg %p108
        %p261 = scmp.lt.s32.totalorder %s26, 1
        %s262 = scalar_select %p261, %s26, 1
        %s263 = scalar_lea.vmem %s2, %s262
        %p264 = pneg %p137
        %p265 = pneg %p134
        %p266 = scmp.lt.s32.totalorder %s26, 1
        %s267 = scalar_select %p266, %s26, 1
        %s268 = scalar_lea.vmem %s3, %s267
        %p269 = pneg %p163
        %p270 = pneg %p160
        %p271 = scmp.lt.s32.totalorder %s26, 1
        %s272 = scalar_select %p271, %s26, 1
        %s273 = scalar_lea.vmem %s4, %s272
        %p274 = scmp.lt.s32.totalorder %s26, 1
        %s275 = scalar_select %p274, %s26, 1
        %s276 = scalar_lea.vmem %s2, %s275
        %p277 = scmp.lt.s32.totalorder %s26, 1
        %s278 = scalar_select %p277, %s26, 1
        %s279 = scalar_lea.vmem %s3, %s278
        %p280 = scmp.lt.s32.totalorder %s26, 1
        %s281 = scalar_select %p280, %s26, 1
        %s282 = scalar_lea.vmem %s4, %s281
        %p283 = scmp.eq.s32.totalorder %s27, 0
        // Predicated region
        $region37: #{tpu_custom_call.1} parent=27 // pred_check
          %p284 = pneg %p283
        $region38: #{tpu_custom_call.1} parent=27 // pred_check_branch
          %286 = sbr.rel (%p284) target = $region40
        $region39: #{tpu_custom_call.1} parent=27 // pred_region
          %287 = vst [vmem:[#allocation2] sm:$0xff] 0.0
          %288 = vst [vmem:[#allocation3] sm:$0xff] 0.0
          %289 = vst [vmem:[#allocation4] sm:$0xff] 0.0
        $region40: #{tpu_custom_call.1} parent=27 // pred_fallthru
          _
        %p290 = scmp.lt.s32.totalorder %s27, 0
        // Predicated region
        $region41: #{tpu_custom_call.1} parent=27 // pred_check
          %p291 = pneg %p290
        $region42: #{tpu_custom_call.1} parent=27 // pred_check_branch
          %293 = sbr.rel (%p291) target = $region44
        $region43: #{tpu_custom_call.1} parent=27 // pred_region
          %v294 = vld [vmem:[#allocation2] sm:$0xff]
          %v295 = vld [vmem:[#allocation3] sm:$0xff]
          %v296 = vld [vmem:[#allocation4] sm:$0xff]
          %v297 = vld [vmem:[%s231] sm:$0xff]
          %v298 = vld [vmem:[%s240] sm:$0xff]
          %v299 = vmul.f32 %v297, %v298
          %v300 = vadd.f32 %v299, 0.0
          %v301 = vadd.f32 %v294, %v300
          %v302 = vadd.f32 %v297, 0.0
          %v303 = vadd.f32 %v295, %v302
          %v304 = vadd.f32 %v298, 0.0
          %v305 = vadd.f32 %v296, %v304
          %306 = vst [vmem:[#allocation2] sm:$0xff] %v301
          %307 = vst [vmem:[#allocation3] sm:$0xff] %v303
          %308 = vst [vmem:[#allocation4] sm:$0xff] %v305
        $region44: #{tpu_custom_call.1} parent=27 // pred_fallthru
          _
        // Predicated region
        $region45: #{tpu_custom_call.1} parent=27 // pred_check
          %p309 = pneg %p283
        $region46: #{tpu_custom_call.1} parent=27 // pred_check_branch
          %311 = sbr.rel (%p309) target = $region48
        $region47: #{tpu_custom_call.1} parent=27 // pred_region
          %v312 = vld [vmem:[#allocation2] sm:$0xff]
          %v313 = vld [vmem:[#allocation3] sm:$0xff]
          %v314 = vld [vmem:[#allocation4] sm:$0xff]
          %v315 = vld [vmem:[%s231] sm:$0xff]
          %v316 = vld [vmem:[%s240] sm:$0xff]
          %v317 = vmul.f32 %v315, %v316
          %v318 = vadd.f32 %v317, 0.0
          %v319 = vadd.f32 %v312, %v318
          %v320 = vadd.f32 %v315, 0.0
          %v321 = vadd.f32 %v313, %v320
          %v322 = vadd.f32 %v316, 0.0
          %v323 = vadd.f32 %v314, %v322
          %324 = vst [vmem:[#allocation2] sm:$0xff] %v319
          %325 = vst [vmem:[#allocation3] sm:$0xff] %v321
          %326 = vst [vmem:[#allocation4] sm:$0xff] %v323
          %v327 = vld [vmem:[#allocation2] sm:$0xff]
          %328 = vadd.xlane.f32.xlu0 %v327
          %v329 = vpop.xlane.xlu0 %328
          %v330 = vrot.slane %v329, 4
          %v331 = vadd.f32 %v329, %v330
          %v332 = vrot.slane %v331, 2
          %v333 = vadd.f32 %v331, %v332
          %v334 = vrot.slane %v333, 1
          %v335 = vadd.f32 %v333, %v334
          %s336 = vtos %v335
          %v337 = vstv %s336
          %vm338 = vcmask 0
          %339 = vst.msk [vmem:[%s276] sm:$0x1] %vm338, %v337
          %v340 = vld [vmem:[#allocation3] sm:$0xff]
          %341 = vadd.xlane.f32.xlu0 %v340
          %v342 = vpop.xlane.xlu0 %341
          %v343 = vrot.slane %v342, 4
          %v344 = vadd.f32 %v342, %v343
          %v345 = vrot.slane %v344, 2
          %v346 = vadd.f32 %v344, %v345
          %v347 = vrot.slane %v346, 1
          %v348 = vadd.f32 %v346, %v347
          %s349 = vtos %v348
          %v350 = vstv %s349
          %351 = vst.msk [vmem:[%s279] sm:$0x1] %vm338, %v350
          %v352 = vld [vmem:[#allocation4] sm:$0xff]
          %353 = vadd.xlane.f32.xlu0 %v352
          %v354 = vpop.xlane.xlu0 %353
          %v355 = vrot.slane %v354, 4
          %v356 = vadd.f32 %v354, %v355
          %v357 = vrot.slane %v356, 2
          %v358 = vadd.f32 %v356, %v357
          %v359 = vrot.slane %v358, 1
          %v360 = vadd.f32 %v358, %v359
          %s361 = vtos %v360
          %v362 = vstv %s361
          %363 = vst.msk [vmem:[%s282] sm:$0x1] %vm338, %v362
        $region48: #{tpu_custom_call.1} parent=27 // pred_fallthru
          _
        %p364 = scmp.lt.s32.totalorder %s26, 1
        %s365 = scalar_select %p364, %s26, 1
        %s366 = scalar_lea.vmem %s2, %s365
        %p367 = scmp.lt.s32.totalorder %s26, 1
        %s368 = scalar_select %p367, %s26, 1
        %s369 = scalar_lea.vmem %s3, %s368
        %p370 = scmp.lt.s32.totalorder %s26, 1
        %s371 = scalar_select %p370, %s26, 1
        %s372 = scalar_lea.vmem %s4, %s371
        // Predicated region
        $region49: #{tpu_custom_call.1} parent=27 // pred_check
          %p373 = pneg %p108
        $region50: #{tpu_custom_call.1} parent=27 // pred_check_branch
          %375 = sbr.rel (%p373) target = $region52
        $region51: #{tpu_custom_call.1} parent=27 // pred_region
          _
        $region52: #{tpu_custom_call.1} parent=27 // pred_fallthru
          _
        // Predicated region
        $region53: #{tpu_custom_call.1} parent=27 // pred_check
          %p376 = pneg %p134
        $region54: #{tpu_custom_call.1} parent=27 // pred_check_branch
          %378 = sbr.rel (%p376) target = $region56
        $region55: #{tpu_custom_call.1} parent=27 // pred_region
          _
        $region56: #{tpu_custom_call.1} parent=27 // pred_fallthru
          _
        // Predicated region
        $region57: #{tpu_custom_call.1} parent=27 // pred_check
          %p379 = pneg %p160
        $region58: #{tpu_custom_call.1} parent=27 // pred_check_branch
          %381 = sbr.rel (%p379) target = $region60
        $region59: #{tpu_custom_call.1} parent=27 // pred_region
          _
        $region60: #{tpu_custom_call.1} parent=27 // pred_fallthru
          _
      $region28: #{tpu_custom_call.1} parent=5 // pred_fallthru
        _
      %p382 = scmp.le.s32.totalorder 2, %s17
      // Predicated region
      $region61: #{tpu_custom_call.1} parent=5 // pred_check
        %p383 = pneg %p382
      $region62: #{tpu_custom_call.1} parent=5 // pred_check_branch
        %385 = sbr.rel (%p383) target = $region64
      $region63: #{tpu_custom_call.1} parent=5 // pred_region
        %s386 = ssub.s32 %s17, 2
        // Predicated region
        $region65: #{tpu_custom_call.1} parent=63 // pred_check
          %p387 = pneg %p114
        $region66: #{tpu_custom_call.1} parent=63 // pred_check_branch
          %389 = sbr.rel (%p387) target = $region68
        $region67: #{tpu_custom_call.1} parent=63 // pred_region
          %p390 = scmp.lt.s32.totalorder %s28, 1
          %s391 = scalar_select %p390, %s28, 1
          %s392 = scalar_lea.vmem %s2, %s391
        $region68: #{tpu_custom_call.1} parent=63 // pred_fallthru
          _
        // Predicated region
        $region69: #{tpu_custom_call.1} parent=63 // pred_check
          %p393 = pneg %p140
        $region70: #{tpu_custom_call.1} parent=63 // pred_check_branch
          %395 = sbr.rel (%p393) target = $region72
        $region71: #{tpu_custom_call.1} parent=63 // pred_region
          %p396 = scmp.lt.s32.totalorder %s28, 1
          %s397 = scalar_select %p396, %s28, 1
          %s398 = scalar_lea.vmem %s3, %s397
        $region72: #{tpu_custom_call.1} parent=63 // pred_fallthru
          _
        // Predicated region
        $region73: #{tpu_custom_call.1} parent=63 // pred_check
          %p399 = pneg %p166
        $region74: #{tpu_custom_call.1} parent=63 // pred_check_branch
          %401 = sbr.rel (%p399) target = $region76
        $region75: #{tpu_custom_call.1} parent=63 // pred_region
          %p402 = scmp.lt.s32.totalorder %s28, 1
          %s403 = scalar_select %p402, %s28, 1
          %s404 = scalar_lea.vmem %s4, %s403
        $region76: #{tpu_custom_call.1} parent=63 // pred_fallthru
          _
      $region64: #{tpu_custom_call.1} parent=5 // pred_fallthru
        _
    $region6: #{tpu_custom_call.1} parent=1 // loop_footer
      %s21 = sadd.s32 1, %s17
    $region7: #{tpu_custom_call.1} parent=1 // loop_footer_branch
      %16 = sbr.rel target = $region3
    $region8: #{tpu_custom_call.1} parent=1 // loop_exit
      _
    %405 = vsyncpa [#allocation6], 1
    %s406 = scalar_lea.sflag [#allocation6], 1
    %407 = vsyncpa %s406, 1
    %408 = vsyncpa [#allocation8], 1
    %s409 = scalar_lea.sflag [#allocation8], 1
    %410 = vsyncpa %s409, 1

</llo_original>
